<compile_context>
chip_gen: v7x
topology: tpu7x:2x2x1
jax: 0.10.0
libtpu: 0.0.40
codegen_flags: <defaults>
</compile_context>

<pallas_src>
import math
from functools import partial

import numpy as np
import jax
import jax.numpy as jnp
from jax.experimental import pallas as pl
from jax.experimental.pallas import tpu as pltpu


def _round_up(x, m):
    return ((x + m - 1) // m) * m


def _erf_poly(x):
    # Abramowitz & Stegun 7.1.26.  The approx reciprocal (EUP slot) injects
    # ~1e-4 absolute error into GELU -- well inside the 1e-2 test tolerance.
    # TODO(synk): switch to an exact reciprocal / lax.erf before tightening tolerances.
    a1, a2, a3, a4, a5 = 0.254829592, -0.284496736, 1.421413741, -1.453152027, 1.061405429
    p = 0.3275911
    ax = jnp.abs(x)
    t = pl.reciprocal(1.0 + p * ax, approx=True)
    poly = ((((a5 * t + a4) * t + a3) * t + a2) * t + a1) * t
    y = 1.0 - poly * jnp.exp(-ax * ax)
    return jnp.where(x >= 0, y, -y)


def _make_kernel(F_out):
    inv_cnt = 1.0 / float(F_out)          # InstanceNorm2d averages over H_out*W_out
    inv_sqrt2 = 1.0 / math.sqrt(2.0)

    def kernel(w_ref, p_ref, o_ref):
        # w_ref: (C_out, CKK_pad) bf16   -- flattened conv weight (shared across grid)
        # p_ref: (CKK_pad, F_out) bf16   -- im2col patches of ONE batch (valid pixels only)
        # o_ref: (C_out, F_out) f32      -- conv + InstanceNorm + GELU for that batch
        y = jnp.dot(w_ref[...], p_ref[...], preferred_element_type=jnp.float32)

        # ---- InstanceNorm2d (affine=False, eps=1e-5): stats over exactly H*W lanes ----
        mean = jnp.sum(y, axis=1, keepdims=True) * inv_cnt
        cent = y - mean
        var = jnp.sum(cent * cent, axis=1, keepdims=True) * inv_cnt     # biased var
        xhat = cent * jax.lax.rsqrt(var + 1e-5)

        # ---- exact-erf GELU ----
        # TODO(synk): on v6e/v7x run this polynomial in bf16 (gate on pltpu.get_tpu_info());
        # kept f32 here so one kernel runs unchanged on v5e (no bf16 VPU/EUP).
        o_ref[...] = (0.5 * xhat * (1.0 + _erf_poly(xhat * inv_sqrt2))).astype(o_ref.dtype)

    return kernel


def prepare_weight(weight):
    """One-time prep: (C_out, C_in, K, K) f32 -> (C_out, CKK_pad) bf16, zero-padded."""
    C_out, C_in, K, _ = weight.shape
    ckk = C_in * K * K
    ckk_pad = _round_up(ckk, 16)                 # bf16 packs 16 sublanes per vreg
    w_flat = weight.reshape(C_out, ckk)
    return jnp.pad(w_flat, ((0, 0), (0, ckk_pad - ckk))).astype(jnp.bfloat16)


def basic_conv_pallas(x, w_flat, *, C_in, K, stride=1):
    """BasicConv forward: Conv2d(pad=K//2, bias dropped) -> InstanceNorm2d -> GELU.

    x: (N, C_in, H, W) f32 NCHW; w_flat: prepare_weight(weight) output.
    """
    N, _, H, W = x.shape
    C_out, ckk_pad = w_flat.shape
    assert K % 2 == 1, "padding = K // 2 gives 'same' output only for odd K"
    assert stride == 1, "stride=1 specialization (matches this module config)"
    # TODO(synk): general stride / ConvTranspose2d path not implemented (not used here).

    pad = K // 2
    H_out, W_out = H, W
    F_out = H_out * W_out                        # 256 lanes per batch (2 x 128: aligned)
    L = N * F_out                                # 512 lanes total (4 x 128)
    ckk = C_in * K * K

    # ---- wrapper glue (plain JAX, single fusion): im2col over valid pixels ----
    x_pad = jnp.pad(x, ((0, 0), (0, 0), (pad, pad), (pad, pad)))
    cols = jnp.stack([x_pad[:, :, kh:kh + H_out, kw:kw + W_out]
                      for kh in range(K) for kw in range(K)], axis=0)   # (K*K, N, C_in, H, W)
    cols = jnp.transpose(cols, (2, 0, 1, 3, 4)).reshape(ckk, L)         # (c_in,kh,kw) x (n,i,j)
    cols = jnp.pad(cols, ((0, ckk_pad - ckk), (0, 0))).astype(jnp.bfloat16)

    cost = pl.CostEstimate(
        flops=2 * C_out * ckk * L,
        transcendentals=2 * C_out * L,           # exp + approx-recip per output element
        bytes_accessed=w_flat.size * 2 + cols.size * 2 + C_out * L * 4,
    )

    out_flat = pl.pallas_call(
        _make_kernel(F_out),
        out_shape=jax.ShapeDtypeStruct((C_out, L), jnp.float32),
        grid_spec=pltpu.PrefetchScalarGridSpec(
            num_scalar_prefetch=0,
            grid=(N,),                                                     # one batch / step
            in_specs=[pl.BlockSpec((C_out, ckk_pad), lambda n: (0, 0)),    # weight: resident
                      pl.BlockSpec((ckk_pad, F_out), lambda n: (0, n))],   # per-batch patches
            out_specs=pl.BlockSpec((C_out, F_out), lambda n: (0, n)),
        ),
        compiler_params=pltpu.CompilerParams(dimension_semantics=("parallel",)),
        cost_estimate=cost,
    )(w_flat, cols)

    # (C_out, N, H, W) -> NCHW.  No pad columns to slice off: lanes are valid pixels only.
    return jnp.transpose(out_flat.reshape(C_out, N, H_out, W_out), (1, 0, 2, 3))


def basic_conv_ref(x, weight, stride=1):
    """Pure-JAX reference of the same forward pass (f32, exact erf GELU)."""
    K = weight.shape[-1]
    pad = K // 2
    y = jax.lax.conv_general_dilated(
        x, weight, window_strides=(stride, stride),
        padding=((pad, pad), (pad, pad)),
        dimension_numbers=("NCHW", "OIHW", "NCHW"),
        precision=jax.lax.Precision.HIGHEST)
    mean = y.mean(axis=(2, 3), keepdims=True)
    var = y.var(axis=(2, 3), keepdims=True)      # biased var, like InstanceNorm2d
    y = (y - mean) / jnp.sqrt(var + 1e-5)
    return jax.nn.gelu(y, approximate=False)


if __name__ == "__main__":
    key = jax.random.PRNGKey(0)
    kx, kw = jax.random.split(key)

    N, C_in, C_out, H, W, K, stride = 2, 4, 8, 16, 16, 3, 1
    x = jax.random.normal(kx, (N, C_in, H, W), dtype=jnp.float32)
    fan_in = C_in * K * K
    weight = jax.random.normal(kw, (C_out, C_in, K, K), dtype=jnp.float32) / math.sqrt(fan_in)

    # The kernel feeds the MXU bf16 operands; round the example inputs to
    # bf16-representable values so the f32 reference comparison stays tight.
    x = x.astype(jnp.bfloat16).astype(jnp.float32)
    weight = weight.astype(jnp.bfloat16).astype(jnp.float32)

    w_flat = prepare_weight(weight)              # one-time weight prep (off the hot path)
    fwd = jax.jit(partial(basic_conv_pallas, C_in=C_in, K=K, stride=stride))

    out = fwd(x, w_flat)
    jax.block_until_ready(out)

    ref = basic_conv_ref(x, weight, stride=stride)
    np.testing.assert_allclose(np.asarray(out), np.asarray(ref), atol=1e-2, rtol=1e-2)
    print("KERNEL_OK")
</pallas_src>

<mosaic_0001>
module attributes {stable_mosaic.version = 11 : i64} {
  func.func @kernel(%arg0: i32, %arg1: memref<8x48xbf16, #tpu.memory_space<vmem>>, %arg2: memref<48x256xbf16, #tpu.memory_space<vmem>>, %arg3: memref<8x256xf32, #tpu.memory_space<vmem>>) attributes {dimension_semantics = [#tpu.dimension_semantics<parallel>], iteration_bounds = array<i64: 2>, scalar_prefetch = 0 : i64, scratch_operands = 0 : i64, tpu.core_type = #tpu.core_type<tc>, window_params = [{pipeline_mode = #tpu.pipeline_mode<synchronous>, transform_indices = @transform_0, window_bounds = array<i64: 8, 48>}, {transform_indices = @transform_1, window_bounds = array<i64: 48, 256>}, {transform_indices = @transform_2, window_bounds = array<i64: 8, 256>}]} {
    %c0 = arith.constant 0 : index
    %c0_0 = arith.constant 0 : index
    %0 = vector.load %arg1[%c0, %c0_0] : memref<8x48xbf16, #tpu.memory_space<vmem>>, vector<8x48xbf16>
    %c0_1 = arith.constant 0 : index
    %c0_2 = arith.constant 0 : index
    %1 = vector.load %arg2[%c0_1, %c0_2] : memref<48x256xbf16, #tpu.memory_space<vmem>>, vector<48x256xbf16>
    %cst = arith.constant dense<0.000000e+00> : vector<8x256xf32>
    %2 = tpu.matmul %0, %1, %cst {dimension_numbers = #tpu.dot_dimension_numbers<[1], [0], [0], [1], [0, 0, 1, 1], [], []>} : vector<8x48xbf16>, vector<48x256xbf16>, vector<8x256xf32> -> vector<8x256xf32>
    %cst_3 = arith.constant dense<0.000000e+00> : vector<8xf32>
    %3 = vector.multi_reduction <add>, %2, %cst_3 [1] : vector<8x256xf32> to vector<8xf32>
    %4 = vector.shape_cast %3 : vector<8xf32> to vector<8x1xf32>
    %cst_4 = arith.constant 3.906250e-03 : f32
    %5 = vector.broadcast %cst_4 : f32 to vector<8x1xf32>
    %6 = arith.mulf %4, %5 : vector<8x1xf32>
    %7 = vector.broadcast %6 : vector<8x1xf32> to vector<8x256xf32>
    %8 = arith.subf %2, %7 : vector<8x256xf32>
    %9 = arith.mulf %8, %8 : vector<8x256xf32>
    %cst_5 = arith.constant dense<0.000000e+00> : vector<8xf32>
    %10 = vector.multi_reduction <add>, %9, %cst_5 [1] : vector<8x256xf32> to vector<8xf32>
    %11 = vector.shape_cast %10 : vector<8xf32> to vector<8x1xf32>
    %cst_6 = arith.constant 3.906250e-03 : f32
    %12 = vector.broadcast %cst_6 : f32 to vector<8x1xf32>
    %13 = arith.mulf %11, %12 : vector<8x1xf32>
    %cst_7 = arith.constant 9.99999974E-6 : f32
    %14 = vector.broadcast %cst_7 : f32 to vector<8x1xf32>
    %15 = arith.addf %13, %14 : vector<8x1xf32>
    %16 = math.rsqrt %15 : vector<8x1xf32>
    %17 = vector.broadcast %16 : vector<8x1xf32> to vector<8x256xf32>
    %18 = arith.mulf %8, %17 : vector<8x256xf32>
    %cst_8 = arith.constant 5.000000e-01 : f32
    %19 = vector.broadcast %cst_8 : f32 to vector<8x256xf32>
    %20 = arith.mulf %19, %18 : vector<8x256xf32>
    %cst_9 = arith.constant 0.707106769 : f32
    %21 = vector.broadcast %cst_9 : f32 to vector<8x256xf32>
    %22 = arith.mulf %18, %21 : vector<8x256xf32>
    %23 = math.absf %22 : vector<8x256xf32>
    %cst_10 = arith.constant 0.327591091 : f32
    %24 = vector.broadcast %cst_10 : f32 to vector<8x256xf32>
    %25 = arith.mulf %24, %23 : vector<8x256xf32>
    %cst_11 = arith.constant 1.000000e+00 : f32
    %26 = vector.broadcast %cst_11 : f32 to vector<8x256xf32>
    %27 = arith.addf %26, %25 : vector<8x256xf32>
    %28 = tpu.reciprocal %27 {approx = true} : vector<8x256xf32> -> vector<8x256xf32>
    %cst_12 = arith.constant 1.06140542 : f32
    %29 = vector.broadcast %cst_12 : f32 to vector<8x256xf32>
    %30 = arith.mulf %29, %28 : vector<8x256xf32>
    %cst_13 = arith.constant -1.45315206 : f32
    %31 = vector.broadcast %cst_13 : f32 to vector<8x256xf32>
    %32 = arith.addf %30, %31 : vector<8x256xf32>
    %33 = arith.mulf %32, %28 : vector<8x256xf32>
    %cst_14 = arith.constant 1.42141378 : f32
    %34 = vector.broadcast %cst_14 : f32 to vector<8x256xf32>
    %35 = arith.addf %33, %34 : vector<8x256xf32>
    %36 = arith.mulf %35, %28 : vector<8x256xf32>
    %cst_15 = arith.constant -0.284496725 : f32
    %37 = vector.broadcast %cst_15 : f32 to vector<8x256xf32>
    %38 = arith.addf %36, %37 : vector<8x256xf32>
    %39 = arith.mulf %38, %28 : vector<8x256xf32>
    %cst_16 = arith.constant 0.254829586 : f32
    %40 = vector.broadcast %cst_16 : f32 to vector<8x256xf32>
    %41 = arith.addf %39, %40 : vector<8x256xf32>
    %42 = arith.mulf %41, %28 : vector<8x256xf32>
    %cst_17 = arith.constant 0.000000e+00 : f32
    %43 = vector.broadcast %cst_17 : f32 to vector<8x256xf32>
    %44 = arith.subf %43, %23 : vector<8x256xf32>
    %45 = arith.mulf %44, %23 : vector<8x256xf32>
    %46 = math.exp %45 : vector<8x256xf32>
    %47 = arith.mulf %42, %46 : vector<8x256xf32>
    %cst_18 = arith.constant 1.000000e+00 : f32
    %48 = vector.broadcast %cst_18 : f32 to vector<8x256xf32>
    %49 = arith.subf %48, %47 : vector<8x256xf32>
    %cst_19 = arith.constant 0.000000e+00 : f32
    %50 = vector.broadcast %cst_19 : f32 to vector<8x256xf32>
    %51 = arith.cmpf oge, %22, %50 : vector<8x256xf32>
    %cst_20 = arith.constant 0.000000e+00 : f32
    %52 = vector.broadcast %cst_20 : f32 to vector<8x256xf32>
    %53 = arith.subf %52, %49 : vector<8x256xf32>
    %54 = arith.select %51, %49, %53 : vector<8x256xi1>, vector<8x256xf32>
    %cst_21 = arith.constant 1.000000e+00 : f32
    %55 = vector.broadcast %cst_21 : f32 to vector<8x256xf32>
    %56 = arith.addf %55, %54 : vector<8x256xf32>
    %57 = arith.mulf %20, %56 : vector<8x256xf32>
    %c0_22 = arith.constant 0 : index
    %c0_23 = arith.constant 0 : index
    %58 = vector.load %arg3[%c0_22, %c0_23] : memref<8x256xf32, #tpu.memory_space<vmem>>, vector<8x256xf32>
    tpu.vector_store %arg3[%c0_22, %c0_23], %57 {strides = array<i32>} : memref<8x256xf32, #tpu.memory_space<vmem>>, vector<8x256xf32>,
    return
  }
  func.func @transform_0(%arg0: i32) -> (i32, i32) {
    %c0_i32 = arith.constant 0 : i32
    %c0_i32_0 = arith.constant 0 : i32
    %c0_i32_1 = arith.constant 0 : i32
    return %c0_i32, %c0_i32_0 : i32, i32
  }
  func.func @transform_1(%arg0: i32) -> (i32, i32) {
    %c0_i32 = arith.constant 0 : i32
    %c0_i32_0 = arith.constant 0 : i32
    return %c0_i32, %arg0 : i32, i32
  }
  func.func @transform_2(%arg0: i32) -> (i32, i32) {
    %c0_i32 = arith.constant 0 : i32
    %c0_i32_0 = arith.constant 0 : i32
    return %c0_i32, %arg0 : i32, i32
  }
}

</mosaic_0001>

<llo_original>
// kernel: basic_conv_pallas.1
$region0: #{basic_conv_pallas.1}
  #allocation0 [shape = 'u32[]', space=smem, size = 0x4, offset = 0x4, fixed_abs, tag = 'smem constant byte address 0x4 - core index']
  #allocation1 [shape = 'u32[144,128]{1,0:T(1,128)}', space=vmem, size = 0x12000, scoped, tag = 'internal scratch']
  %s0 = inlined_call_operand.vmem [shape: bf16[8,48], index: 0, kind: input, shape index: {}]
  %s1 = inlined_call_operand.vmem [shape: bf16[48,512], index: 1, kind: input, shape index: {}]
  %s2 = inlined_call_operand.vmem [shape: f32[8,512], index: 2, kind: output, shape index: {}]
  %s3 = sld [smem:[#allocation0]]
  $region79: #{basic_conv_pallas.1} parent=0
    _
  %s5 = ssub.s32 1, %s3
  %s6 = scalar_select 0, %s5, %s3
  $region1: #{basic_conv_pallas.1} parent=0
    #allocation2 [shape = 'u8[49152]{0}', space=vmem, size = 0xc000, scoped, tag = 'input window, operand 1']
    loop: start=0, step=1, limit=4
    $region2: #{basic_conv_pallas.1} parent=1 // loop_pre_header
      _
    $region3: #{basic_conv_pallas.1} parent=1 // loop_header
      %s8 = sphi 0, %s12
      %p9 = scmp.ge.s32.totalorder %s8, 4
      %s16 = sphi 0, %s16
      %s18 = sphi 0, %s16
      %s19 = sphi 0, %s18
      %s33 = sphi 0, %s19
      %s39 = sphi 0, %s41
      %s42 = sphi 0, %s39
      %s43 = sphi 0, %s42
      %s59 = sphi 0, %s43
      %s65 = sphi 0, %s67
      %s68 = sphi 0, %s65
      %s69 = sphi 0, %s68
      %s85 = sphi 0, %s69
    $region4: #{basic_conv_pallas.1} parent=1 // loop_header_branch
      %11 = sbr.rel (%p9) target = $region8
    $region5: #{basic_conv_pallas.1} parent=1 // loop_body
      %s13 = ssub.s32 %s8, 1
      %s14 = ssub.s32 %s8, 2
      %s15 = sadd.s32 %s8, 1
      %s17 = sadd.s32 %s16, 1
      %p20 = scmp.eq.s32.totalorder %s8, 1
      %p21 = scmp.ne.s32.totalorder %s16, %s18
      %p22 = scmp.eq.s32.totalorder %s8, 0
      %p23 = por %p21, %p22
      %p24 = scmp.ne.s32.totalorder %s16, %s18
      %p25 = scmp.eq.s32.totalorder %s13, 1
      %p26 = por %p24, %p25
      %p27 = scmp.ne.s32.totalorder %s18, %s19
      %p28 = scmp.eq.s32.totalorder %s13, 0
      %p29 = por %p27, %p28
      %p30 = scmp.ne.s32.totalorder %s18, %s19
      %p31 = scmp.eq.s32.totalorder %s14, 1
      %p32 = por %p30, %p31
      %p34 = scmp.ne.s32.totalorder %s19, %s33
      %p35 = scmp.eq.s32.totalorder %s14, 0
      %p36 = por %p34, %p35
      %s37 = ssub.s32 %s8, %s15
      %p38 = scmp.eq.s32.totalorder %s37, 0
      %s40 = sadd.s32 %s39, 1
      %s41 = scalar_select %p38, %s39, %s40
      %p44 = pneg %p38
      %p45 = scmp.eq.s32.totalorder %s8, 1
      %p46 = por %p44, %p45
      %p47 = scmp.ne.s32.totalorder %s39, %s42
      %p48 = scmp.eq.s32.totalorder %s8, 0
      %p49 = por %p47, %p48
      %p50 = scmp.ne.s32.totalorder %s39, %s42
      %p51 = scmp.eq.s32.totalorder %s13, 1
      %p52 = por %p50, %p51
      %p53 = scmp.ne.s32.totalorder %s42, %s43
      %p54 = scmp.eq.s32.totalorder %s13, 0
      %p55 = por %p53, %p54
      %p56 = scmp.ne.s32.totalorder %s42, %s43
      %p57 = scmp.eq.s32.totalorder %s14, 1
      %p58 = por %p56, %p57
      %p60 = scmp.ne.s32.totalorder %s43, %s59
      %p61 = scmp.eq.s32.totalorder %s14, 0
      %p62 = por %p60, %p61
      %s63 = ssub.s32 %s8, %s15
      %p64 = scmp.eq.s32.totalorder %s63, 0
      %s66 = sadd.s32 %s65, 1
      %s67 = scalar_select %p64, %s65, %s66
      %p70 = pneg %p64
      %p71 = scmp.eq.s32.totalorder %s8, 1
      %p72 = por %p70, %p71
      %p73 = scmp.ne.s32.totalorder %s65, %s68
      %p74 = scmp.eq.s32.totalorder %s8, 0
      %p75 = por %p73, %p74
      %p76 = scmp.ne.s32.totalorder %s65, %s68
      %p77 = scmp.eq.s32.totalorder %s13, 1
      %p78 = por %p76, %p77
      %p79 = scmp.ne.s32.totalorder %s68, %s69
      %p80 = scmp.eq.s32.totalorder %s13, 0
      %p81 = por %p79, %p80
      %p82 = scmp.ne.s32.totalorder %s68, %s69
      %p83 = scmp.eq.s32.totalorder %s14, 1
      %p84 = por %p82, %p83
      %p86 = scmp.ne.s32.totalorder %s69, %s85
      %p87 = scmp.eq.s32.totalorder %s14, 0
      %p88 = por %p86, %p87
      %p89 = scmp.le.s32.totalorder 1, %s8
      %p90 = scmp.lt.s32.totalorder %s8, 3
      %p91 = pnand %p89, %p90
      %p92 = pneg %p91
      // Predicated region
      $region9: #{basic_conv_pallas.1} parent=5 // pred_check
        _
      $region10: #{basic_conv_pallas.1} parent=5 // pred_check_branch
        %94 = sbr.rel (%p91) target = $region12
      $region11: #{basic_conv_pallas.1} parent=5 // pred_region
        %s95 = ssub.s32 %s8, 1
        // Predicated region
        $region13: #{basic_conv_pallas.1} parent=11 // pred_check
          %p96 = pneg %p29
        $region14: #{basic_conv_pallas.1} parent=11 // pred_check_branch
          %98 = sbr.rel (%p96) target = $region16
        $region15: #{basic_conv_pallas.1} parent=11 // pred_region
          _
        $region16: #{basic_conv_pallas.1} parent=11 // pred_fallthru
          _
      $region12: #{basic_conv_pallas.1} parent=5 // pred_fallthru
        _
      %p99 = scmp.lt.s32.totalorder %s8, 2
      // Predicated region
      $region17: #{basic_conv_pallas.1} parent=5 // pred_check
        %p100 = pneg %p99
      $region18: #{basic_conv_pallas.1} parent=5 // pred_check_branch
        %102 = sbr.rel (%p100) target = $region20
      $region19: #{basic_conv_pallas.1} parent=5 // pred_region
        // Predicated region
        $region21: #{basic_conv_pallas.1} parent=19 // pred_check
          %p103 = pneg %p49
        $region22: #{basic_conv_pallas.1} parent=19 // pred_check_branch
          %105 = sbr.rel (%p103) target = $region24
        $region23: #{basic_conv_pallas.1} parent=19 // pred_region
          %s106 = sand.u32 %s39, 1
          %s107 = sand.u32 %s39, 1
          %s108 = smul.addr %s107, 48
          %s109 = scalar_lea.vmem [#allocation2], %s108
          %s110 = smul.u32 2, %s8
          %s111 = smul.addr %s110, 4
          %s112 = scalar_lea.vmem %s1, %s111
          // Predicated region
          $region25: #{basic_conv_pallas.1} parent=23 // pred_check
            _
          $region26: #{basic_conv_pallas.1} parent=23 // pred_check_branch
            %114 = sbr.rel (0) target = $region28
          $region27: #{basic_conv_pallas.1} parent=23 // pred_region
            // Predicated region
            $region29: #{basic_conv_pallas.1} parent=27 // pred_check
              _
            $region30: #{basic_conv_pallas.1} parent=27 // pred_check_branch
              %116 = sbr.rel (0) target = $region32
            $region31: #{basic_conv_pallas.1} parent=27 // pred_region
              // Predicated region
              $region44: #{basic_conv_pallas.1} parent=31 // pred_check
                _
              $region45: #{basic_conv_pallas.1} parent=31 // pred_check_branch
                %141 = sbr.rel (0) target = $region47
              $region46: #{basic_conv_pallas.1} parent=31 // pred_region
                loop: start=0, step=1, limit=1
                $region48: #{basic_conv_pallas.1} parent=46 // loop_pre_header
                  _
                $region49: #{basic_conv_pallas.1} parent=46 // loop_header
                  %s143 = sphi 0, %s147
                  %p144 = scmp.ge.s32.totalorder %s143, 1
                  %s148 = sphi %s112, %s112
                  %s149 = sphi %s109, %s109
                $region50: #{basic_conv_pallas.1} parent=46 // loop_header_branch
                  %146 = sbr.rel (%p144) target = $region54
                $region51: #{basic_conv_pallas.1} parent=46 // loop_body
                  %v150 = vld [vmem:[%s148] sm:$0xff]
                  %151 = vst [vmem:[%s149] sm:$0xff] %v150
                  %v152 = vld [vmem:[%s148 + $0x10] sm:$0xff]
                  %153 = vst [vmem:[%s149 + $0x8] sm:$0xff] %v152
                  %v154 = vld [vmem:[%s148 + $0x20] sm:$0xff]
                  %155 = vst [vmem:[%s149 + $0x10] sm:$0xff] %v154
                  %v156 = vld [vmem:[%s148 + $0x30] sm:$0xff]
                  %157 = vst [vmem:[%s149 + $0x18] sm:$0xff] %v156
                  %v158 = vld [vmem:[%s148 + $0x40] sm:$0xff]
                  %159 = vst [vmem:[%s149 + $0x20] sm:$0xff] %v158
                  %v160 = vld [vmem:[%s148 + $0x50] sm:$0xff]
                  %161 = vst [vmem:[%s149 + $0x28] sm:$0xff] %v160
                $region52: #{basic_conv_pallas.1} parent=46 // loop_footer
                  %s147 = sadd.s32 1, %s143
                $region53: #{basic_conv_pallas.1} parent=46 // loop_footer_branch
                  %142 = sbr.rel target = $region49
                $region54: #{basic_conv_pallas.1} parent=46 // loop_exit
                  _
              $region47: #{basic_conv_pallas.1} parent=31 // pred_fallthru
                _
              // Predicated region
              $region55: #{basic_conv_pallas.1} parent=31 // pred_check
                _
              $region56: #{basic_conv_pallas.1} parent=31 // pred_check_branch
                %163 = sbr.rel target = $region58
              $region57: #{basic_conv_pallas.1} parent=31 // pred_region
                _
              $region58: #{basic_conv_pallas.1} parent=31 // pred_fallthru
                _
            $region32: #{basic_conv_pallas.1} parent=27 // pred_fallthru
              _
            // Predicated region
            $region33: #{basic_conv_pallas.1} parent=27 // pred_check
              _
            $region34: #{basic_conv_pallas.1} parent=27 // pred_check_branch
              %118 = sbr.rel target = $region36
            $region35: #{basic_conv_pallas.1} parent=27 // pred_region
              loop: start=0, step=1, limit=1
              $region37: #{basic_conv_pallas.1} parent=35 // loop_pre_header
                _
              $region38: #{basic_conv_pallas.1} parent=35 // loop_header
                %s121 = sphi 0, %s125
                %p122 = scmp.ge.s32.totalorder %s121, 1
                %s126 = sphi %s112, %s112
                %s127 = sphi %s109, %s109
              $region39: #{basic_conv_pallas.1} parent=35 // loop_header_branch
                %124 = sbr.rel (%p122) target = $region43
              $region40: #{basic_conv_pallas.1} parent=35 // loop_body
                %v128 = vld [vmem:[%s126] sm:$0xff]
                %129 = vst [vmem:[%s127] sm:$0xff] %v128
                %v130 = vld [vmem:[%s126 + $0x10] sm:$0xff]
                %131 = vst [vmem:[%s127 + $0x8] sm:$0xff] %v130
                %v132 = vld [vmem:[%s126 + $0x20] sm:$0xff]
                %133 = vst [vmem:[%s127 + $0x10] sm:$0xff] %v132
                %v134 = vld [vmem:[%s126 + $0x30] sm:$0xff]
                %135 = vst [vmem:[%s127 + $0x18] sm:$0xff] %v134
                %v136 = vld [vmem:[%s126 + $0x40] sm:$0xff]
                %137 = vst [vmem:[%s127 + $0x20] sm:$0xff] %v136
                %v138 = vld [vmem:[%s126 + $0x50] sm:$0xff]
                %139 = vst [vmem:[%s127 + $0x28] sm:$0xff] %v138
              $region41: #{basic_conv_pallas.1} parent=35 // loop_footer
                %s125 = sadd.s32 1, %s121
              $region42: #{basic_conv_pallas.1} parent=35 // loop_footer_branch
                %120 = sbr.rel target = $region38
              $region43: #{basic_conv_pallas.1} parent=35 // loop_exit
                _
            $region36: #{basic_conv_pallas.1} parent=27 // pred_fallthru
              _
          $region28: #{basic_conv_pallas.1} parent=23 // pred_fallthru
            _
          %164 = vnop
        $region24: #{basic_conv_pallas.1} parent=19 // pred_fallthru
          _
      $region20: #{basic_conv_pallas.1} parent=5 // pred_fallthru
        _
      %p165 = scmp.le.s32.totalorder 1, %s8
      %p166 = scmp.lt.s32.totalorder %s8, 3
      %p167 = pnand %p165, %p166
      %p168 = pneg %p167
      // Predicated region
      $region59: #{basic_conv_pallas.1} parent=5 // pred_check
        _
      $region60: #{basic_conv_pallas.1} parent=5 // pred_check_branch
        %170 = sbr.rel (%p167) target = $region62
      $region61: #{basic_conv_pallas.1} parent=5 // pred_region
        %s171 = ssub.s32 %s8, 1
        %s172 = sand.u32 %s42, 1
        %s173 = sand.u32 %s42, 1
        %s174 = smul.addr %s173, 48
        %s175 = scalar_lea.vmem [#allocation2], %s174
        // Predicated region
        $region63: #{basic_conv_pallas.1} parent=61 // pred_check
          %p176 = pneg %p55
        $region64: #{basic_conv_pallas.1} parent=61 // pred_check_branch
          %178 = sbr.rel (%p176) target = $region66
        $region65: #{basic_conv_pallas.1} parent=61 // pred_region
          _
        $region66: #{basic_conv_pallas.1} parent=61 // pred_fallthru
          _
        %p179 = pneg %p29
        %p180 = pneg %p26
        %s181 = sand.u32 %s42, 1
        %s182 = sand.u32 %s42, 1
        %s183 = smul.addr %s182, 48
        %s184 = scalar_lea.vmem [#allocation2], %s183
        %p185 = pneg %p55
        %p186 = pneg %p52
        %p187 = pneg %p81
        %p188 = pneg %p78
        %s189 = smul.u32 2, %s13
        %p190 = scmp.lt.s32.totalorder %s189, 3
        %s191 = scalar_select %p190, %s189, 3
        %s192 = smul.addr %s191, 8
        %s193 = scalar_lea.vmem %s2, %s192
        %s194 = smul.u32 2, %s13
        %s195 = smul.u32 2, %s13
        %p196 = scmp.lt.s32.totalorder %s195, 3
        %s197 = scalar_select %p196, %s195, 3
        %s198 = smul.addr %s197, 8
        %s199 = scalar_lea.vmem %s2, %s198
        %s200 = smul.u32 2, %s13
        %v202 = vld [vmem:[%s0] sm:$0xf]
        %v203 = vld [vmem:[%s175] sm:$0xff]
        %v204 = vld [vmem:[%s175 + $0x8] sm:$0xff]
        %v205 = vld [vmem:[%s175 + $0x10] sm:$0xff]
        %v206 = vld [vmem:[%s175 + $0x18] sm:$0xff]
        %v207 = vld [vmem:[%s175 + $0x20] sm:$0xff]
        %v208 = vld [vmem:[%s175 + $0x28] sm:$0xff]
        %v215 = vunpack.c.l.b16 %v203
        %v216 = vunpack.c.h.b16 %v203
        %v217 = vunpack.c.l.b16 %v204
        %v218 = vunpack.c.h.b16 %v204
        %v219 = vunpack.c.l.b16 %v205
        %v220 = vunpack.c.h.b16 %v205
        %v221 = vunpack.c.l.b16 %v206
        %v222 = vunpack.c.h.b16 %v206
        %v223 = vunpack.c.l.b16 %v207
        %v224 = vunpack.c.h.b16 %v207
        %v225 = vunpack.c.l.b16 %v208
        %v226 = vunpack.c.h.b16 %v208
        %v227 = vpack.c.b16 %v217, %v215
        %v228 = vpack.c.b16 %v218, %v216
        %v229 = vpack.c.b16 %v221, %v219
        %v230 = vpack.c.b16 %v222, %v220
        %v231 = vpack.c.b16 %v225, %v223
        %v232 = vpack.c.b16 %v226, %v224
        %vm239 = vcmask 392192
        %v241 = vsel %vm239, %v202, 0
        %243 = vmatprep.subr.bf16.mxu0 %v228
        %244 = vmatpush1.bf16.msra.mxu0 %v227
        %245 = vmatprep.subr.bf16.mxu0 %v230
        %246 = vmatpush1.bf16.msra.mxu0 %v229
        %247 = vmatprep.subr.bf16.mxu0 %v232
        %248 = vmatpush1.bf16.msra.mxu0 %v231
        %249 = vmatprep.subr.bf16.mxu0 0
        %250 = vmatpush1.bf16.msra.mxu0 0
        %251 = vmatprep.subr.bf16.mxu0 0
        %252 = vmatpush1.bf16.msra.mxu0 0
        %253 = vmatprep.subr.bf16.mxu0 0
        %254 = vmatpush1.bf16.msra.mxu0 0
        %255 = vmatprep.subr.bf16.mxu0 0
        %256 = vmatpush1.bf16.msra.mxu0 0
        %257 = vmatprep.subr.bf16.mxu0 0
        %258 = vmatpush1.bf16.msra.mxu0 0
        %259 = vmatprep.subr.bf16.mxu0 0
        %260 = vmatpush1.bf16.msra.mxu0 0
        %261 = vmatprep.subr.bf16.mxu0 0
        %262 = vmatpush1.bf16.msra.mxu0 0
        %263 = vmatprep.subr.bf16.mxu0 0
        %264 = vmatpush1.bf16.msra.mxu0 0
        %265 = vmatprep.subr.bf16.mxu0 0
        %266 = vmatpush1.bf16.msra.mxu0 0
        %267 = vmatprep.subr.bf16.mxu0 0
        %268 = vmatpush1.bf16.msra.mxu0 0
        %269 = vmatprep.subr.bf16.mxu0 0
        %270 = vmatpush1.bf16.msra.mxu0 0
        %271 = vmatprep.subr.bf16.mxu0 0
        %272 = vmatpush1.bf16.msra.mxu0 0
        %273 = vmatprep.subr.bf16.mxu0 0
        %274 = vmatpush1.bf16.msra.mxu0 0
        %275 = vmatprep.mubr.bf16.mxu0 0
        %276 = vmatmul.mubr.bf16.gmra.mrb[0].mxu0 %v241
        %v277 = vpop.f32.mrb[0].mxu0
        %v278 = vadd.f32 0.0, %v277
        %v279 = vpop.f32.mrb[0].mxu0
        %v280 = vadd.f32 0.0, %v279
        %v281 = vpop.f32.mrb[0].mxu0
        %v282 = vpop.f32.mrb[0].mxu0
        %283 = vdwg.mxu0
        %v284 = vadd.f32 %v278, %v280
        %285 = vadd.xlane.f32.xlu0 %v284
        %v286 = vpop.xlane.xlu0 %285
        %v287 = vmul.f32 %v286, 0.00390625
        %v288 = vsub.f32 %v278, %v287
        %v289 = vsub.f32 %v280, %v287
        %v290 = vmul.f32 %v288, %v288
        %v291 = vmul.f32 %v289, %v289
        %v292 = vadd.f32 %v290, %v291
        %293 = vadd.xlane.f32.xlu0 %v292
        %v294 = vpop.xlane.xlu0 %293
        %v295 = vmul.f32 %v294, 0.00390625
        %v296 = vadd.f32 %v295, 1e-05
        %v297 = vrsqrt.pop %v296
        %v298 = vmul.f32 %v288, %v297
        %v299 = vmul.f32 %v289, %v297
        %v300 = vmul.f32 %v298, 0.5
        %v301 = vmul.f32 %v299, 0.5
        %v302 = vmul.f32 %v298, 0.70710677
        %v303 = vmul.f32 %v299, 0.70710677
        %v304 = vand.u32 2147483647, %v302
        %v305 = vand.u32 2147483647, %v303
        %v306 = vmul.f32 %v304, 0.3275911
        %v307 = vmul.f32 %v305, 0.3275911
        %v308 = vadd.f32 %v306, 1.0
        %v309 = vadd.f32 %v307, 1.0
        %v310 = vrcp.pop %v308
        %v311 = vrcp.pop %v309
        %v312 = vmul.f32 %v310, 1.0614054
        %v313 = vmul.f32 %v311, 1.0614054
        %v314 = vadd.f32 %v312, -1.4531521
        %v315 = vadd.f32 %v313, -1.4531521
        %v316 = vmul.f32 %v314, %v310
        %v317 = vmul.f32 %v315, %v311
        %v318 = vadd.f32 %v316, 1.4214138
        %v319 = vadd.f32 %v317, 1.4214138
        %v320 = vmul.f32 %v318, %v310
        %v321 = vmul.f32 %v319, %v311
        %v322 = vadd.f32 %v320, -0.28449672
        %v323 = vadd.f32 %v321, -0.28449672
        %v324 = vmul.f32 %v322, %v310
        %v325 = vmul.f32 %v323, %v311
        %v326 = vadd.f32 %v324, 0.2548296
        %v327 = vadd.f32 %v325, 0.2548296
        %v328 = vmul.f32 %v326, %v310
        %v329 = vmul.f32 %v327, %v311
        %v330 = vsub.f32 0.0, %v304
        %v331 = vsub.f32 0.0, %v305
        %v332 = vmul.f32 %v330, %v304
        %v333 = vmul.f32 %v331, %v305
        %v334 = vmul.f32 %v332, 1.442695
        %v335 = vpow.pop %v334
        %v336 = vmul.f32 %v333, 1.442695
        %v337 = vpow.pop %v336
        %v338 = vmul.f32 %v328, %v335
        %v339 = vmul.f32 %v329, %v337
        %v340 = vsub.f32 1.0, %v338
        %v341 = vsub.f32 1.0, %v339
        %vm342 = vcmp.ge.f32.partialorder %v302, 0.0
        %vm343 = vcmp.ge.f32.partialorder %v303, 0.0
        %v344 = vsub.f32 0.0, %v340
        %v345 = vsub.f32 0.0, %v341
        %v346 = vsel %vm342, %v340, %v344
        %v347 = vsel %vm343, %v341, %v345
        %v348 = vadd.f32 %v346, 1.0
        %v349 = vadd.f32 %v347, 1.0
        %v350 = vmul.f32 %v300, %v348
        %v351 = vmul.f32 %v301, %v349
        %352 = vst [vmem:[%s199] sm:$0xff] %v350
        %353 = vst [vmem:[%s199 + $0x8] sm:$0xff] %v351
        %s354 = smul.u32 2, %s13
        %p355 = scmp.lt.s32.totalorder %s354, 3
        %s356 = scalar_select %p355, %s354, 3
        %s357 = smul.addr %s356, 8
        %s358 = scalar_lea.vmem %s2, %s357
        // Predicated region
        $region67: #{basic_conv_pallas.1} parent=61 // pred_check
          %p359 = pneg %p78
        $region68: #{basic_conv_pallas.1} parent=61 // pred_check_branch
          %361 = sbr.rel (%p359) target = $region70
        $region69: #{basic_conv_pallas.1} parent=61 // pred_region
          %s362 = smul.u32 2, %s13
        $region70: #{basic_conv_pallas.1} parent=61 // pred_fallthru
          _
      $region62: #{basic_conv_pallas.1} parent=5 // pred_fallthru
        _
      %p363 = scmp.le.s32.totalorder 2, %s8
      // Predicated region
      $region71: #{basic_conv_pallas.1} parent=5 // pred_check
        %p364 = pneg %p363
      $region72: #{basic_conv_pallas.1} parent=5 // pred_check_branch
        %366 = sbr.rel (%p364) target = $region74
      $region73: #{basic_conv_pallas.1} parent=5 // pred_region
        %s367 = ssub.s32 %s8, 2
        // Predicated region
        $region75: #{basic_conv_pallas.1} parent=73 // pred_check
          %p368 = pneg %p84
        $region76: #{basic_conv_pallas.1} parent=73 // pred_check_branch
          %370 = sbr.rel (%p368) target = $region78
        $region77: #{basic_conv_pallas.1} parent=73 // pred_region
          %s371 = smul.u32 2, %s14
          %p372 = scmp.lt.s32.totalorder %s371, 3
          %s373 = scalar_select %p372, %s371, 3
          %s374 = smul.addr %s373, 8
          %s375 = scalar_lea.vmem %s2, %s374
        $region78: #{basic_conv_pallas.1} parent=73 // pred_fallthru
          _
      $region74: #{basic_conv_pallas.1} parent=5 // pred_fallthru
        _
    $region6: #{basic_conv_pallas.1} parent=1 // loop_footer
      %s12 = sadd.s32 1, %s8
    $region7: #{basic_conv_pallas.1} parent=1 // loop_footer_branch
      %7 = sbr.rel target = $region3
    $region8: #{basic_conv_pallas.1} parent=1 // loop_exit
      _

</llo_original>
